<compile_context>
chip_gen: v6e
topology: v6e:2x2x1
jax: 0.10.0
libtpu: 0.0.40
codegen_flags: <defaults>
</compile_context>

<pallas_src>
import functools

import jax
import jax.numpy as jnp
from jax.experimental import pallas as pl
from jax.experimental.pallas import tpu as pltpu


def _speaker_head_kernel(f1_ref, f2_ref, w_ref, b_ref, o1_ref, o2_ref,
                         acc1_ref, acc2_ref, *,
                         seq_len, tt, inv_t, with_relu, use_fc,
                         needs_time_mask):
    # f1_ref/f2_ref : (tb, tt, H) bf16 tiles of each segment's hidden states
    # w_ref         : (H, E) f32 fc1 weight (resident across the grid)
    # b_ref         : (1, E) f32 fc1 bias
    # o1_ref/o2_ref : (tb, E) f32 projected embeddings per segment
    # acc*_ref      : (tb, H) f32 running sums over time (persistent scratch)
    t = pl.program_id(1)
    n_t = pl.num_programs(1)

    @pl.when(t == 0)
    def _init():
        acc1_ref[...] = jnp.zeros_like(acc1_ref)
        acc2_ref[...] = jnp.zeros_like(acc2_ref)

    x1 = f1_ref[...].astype(jnp.float32)
    x2 = f2_ref[...].astype(jnp.float32)

    if needs_time_mask:
        # Zero out rows of the (ragged) last time tile so they don't pollute
        # the sum.  Batch padding rows are discarded by the wrapper slice.
        t_idx = jax.lax.broadcasted_iota(jnp.int32, (1, tt, 1), 1)
        valid = (t * tt + t_idx) < seq_len
        x1 = jnp.where(valid, x1, 0.0)
        x2 = jnp.where(valid, x2, 0.0)

    acc1_ref[...] += jnp.sum(x1, axis=1)
    acc2_ref[...] += jnp.sum(x2, axis=1)

    @pl.when(t == n_t - 1)
    def _finalize():
        def head(acc_ref, o_ref):
            pooled = acc_ref[...] * jnp.float32(inv_t)      # mean over time
            if with_relu:
                pooled = jnp.maximum(pooled, 0.0)
            if use_fc:
                out = jnp.dot(pooled, w_ref[...],
                              preferred_element_type=jnp.float32)  # MXU, tiny
                out = out + b_ref[...]
                if with_relu:
                    out = jnp.maximum(out, 0.0)
            else:
                out = pooled
            o_ref[...] = out.astype(o_ref.dtype)

        head(acc1_ref, o1_ref)
        head(acc2_ref, o2_ref)


def speaker_head(f1, f2, w, b, *, with_relu=True, custom_embed_size=True,
                 tb=8, tt=256):
    """f1, f2: (B, T, H) last_hidden_state of each segment (bf16 or f32).

    Returns (B, 2, E) f32 embeddings (E = w.shape[1] if custom_embed_size
    else H), matching mean -> relu -> fc1 -> relu of the torch module.
    """
    B, T, H = f1.shape
    assert f2.shape == (B, T, H)
    use_fc = bool(custom_embed_size)
    E = w.shape[1] if use_fc else H

    # Tile sizes: time tile must be a multiple of 8 or the full extent.
    tb = min(tb, B)
    tt = T if T <= tt else tt
    n_b = pl.cdiv(B, tb)
    n_t = pl.cdiv(T, tt)
    b_pad = n_b * tb
    needs_time_mask = (T % tt) != 0

    kernel = functools.partial(
        _speaker_head_kernel,
        seq_len=T, tt=tt, inv_t=1.0 / T,
        with_relu=with_relu, use_fc=use_fc,
        needs_time_mask=needs_time_mask)

    grid_spec = pltpu.PrefetchScalarGridSpec(
        num_scalar_prefetch=0,
        grid=(n_b, n_t),
        in_specs=[
            pl.BlockSpec((tb, tt, H), lambda i, t: (i, t, 0)),   # f1 tile
            pl.BlockSpec((tb, tt, H), lambda i, t: (i, t, 0)),   # f2 tile
            pl.BlockSpec((H, E), lambda i, t: (0, 0)),           # weight (resident)
            pl.BlockSpec((1, E), lambda i, t: (0, 0)),           # bias   (resident)
        ],
        out_specs=[
            pl.BlockSpec((tb, E), lambda i, t: (i, 0)),
            pl.BlockSpec((tb, E), lambda i, t: (i, 0)),
        ],
        scratch_shapes=[
            pltpu.VMEM((tb, H), jnp.float32),   # acc for segment 1
            pltpu.VMEM((tb, H), jnp.float32),   # acc for segment 2
        ],
    )

    o1, o2 = pl.pallas_call(
        kernel,
        out_shape=(jax.ShapeDtypeStruct((b_pad, E), jnp.float32),
                   jax.ShapeDtypeStruct((b_pad, E), jnp.float32)),
        grid_spec=grid_spec,
        compiler_params=pltpu.CompilerParams(
            dimension_semantics=("parallel", "arbitrary")),
    )(f1, f2, w, b.reshape(1, E))

    # stack((f1, f2), dim=1) done on the tiny pooled outputs, not the
    # full hidden states.
    return jnp.stack((o1[:B], o2[:B]), axis=1)          # (B, 2, E)


def _xavier_uniform(key, fan_in, fan_out, dtype=jnp.float32):
    # torch.nn.init.xavier_uniform_ on a (fan_out, fan_in) weight
    limit = jnp.sqrt(6.0 / (fan_in + fan_out))
    return jax.random.uniform(key, (fan_in, fan_out), dtype,
                              minval=-limit, maxval=limit)


if __name__ == "__main__":
    # Small shapes consistent with the module: hidden size 768 (wav2vec2-base),
    # custom_embed_size = 128, batch = 2, seq (frames) = 8.
    B, T, H, E = 2, 8, 768, 128
    with_relu = True
    custom_embed_size = True

    key = jax.random.PRNGKey(0)
    k1, k2, kw, kb = jax.random.split(key, 4)

    # Stand-ins for model(seg_i).last_hidden_state, streamed to the kernel in
    # bf16 (halves HBM bytes for this memory-bound pooling).
    f1 = jax.random.normal(k1, (B, T, H), dtype=jnp.float32).astype(jnp.bfloat16)
    f2 = jax.random.normal(k2, (B, T, H), dtype=jnp.float32).astype(jnp.bfloat16)

    # fc1 params (deterministic init, xavier_uniform like init_weights())
    w = _xavier_uniform(kw, H, E)                       # stored as (H, E)
    bound = 1.0 / jnp.sqrt(H)
    b = jax.random.uniform(kb, (E,), jnp.float32, minval=-bound, maxval=bound)

    f_all = speaker_head(f1, f2, w, b,
                         with_relu=with_relu,
                         custom_embed_size=custom_embed_size)
    f_all = jax.block_until_ready(f_all)

    # Pure-JAX reference of the same forward-head semantics (f32 compute on
    # the same bf16 inputs).
    f1_f32 = f1.astype(jnp.float32)
    f2_f32 = f2.astype(jnp.float32)
    ref = jnp.stack((jnp.mean(f1_f32, axis=1), jnp.mean(f2_f32, axis=1)), axis=1)
    if with_relu:
        ref = jnp.maximum(ref, 0.0)
    if custom_embed_size:
        ref = jnp.dot(ref, w, preferred_element_type=jnp.float32) + b
        if with_relu:
            ref = jnp.maximum(ref, 0.0)

    assert f_all.shape == (B, 2, E)
    assert jnp.allclose(f_all, ref, atol=1e-3, rtol=1e-3), (
        float(jnp.max(jnp.abs(f_all - ref))))
    print("KERNEL_OK")
</pallas_src>

<mosaic_0001>
module attributes {stable_mosaic.version = 11 : i64} {
  func.func @_speaker_head_kernel(%arg0: i32, %arg1: i32, %arg2: memref<2x8x768xbf16, #tpu.memory_space<vmem>>, %arg3: memref<2x8x768xbf16, #tpu.memory_space<vmem>>, %arg4: memref<768x128xf32, #tpu.memory_space<vmem>>, %arg5: memref<1x128xf32, #tpu.memory_space<vmem>>, %arg6: memref<2x128xf32, #tpu.memory_space<vmem>>, %arg7: memref<2x128xf32, #tpu.memory_space<vmem>>, %arg8: memref<2x768xf32, #tpu.memory_space<vmem>>, %arg9: memref<2x768xf32, #tpu.memory_space<vmem>>) attributes {dimension_semantics = [#tpu.dimension_semantics<parallel>, #tpu.dimension_semantics<arbitrary>], iteration_bounds = array<i64: 1, 1>, scalar_prefetch = 0 : i64, scratch_operands = 2 : i64, tpu.core_type = #tpu.core_type<tc>, window_params = [{transform_indices = @transform_0, window_bounds = array<i64: 2, 8, 768>}, {transform_indices = @transform_1, window_bounds = array<i64: 2, 8, 768>}, {pipeline_mode = #tpu.pipeline_mode<synchronous>, transform_indices = @transform_2, window_bounds = array<i64: 768, 128>}, {pipeline_mode = #tpu.pipeline_mode<synchronous>, transform_indices = @transform_3, window_bounds = array<i64: 1, 128>}, {transform_indices = @transform_4, window_bounds = array<i64: 2, 128>}, {transform_indices = @transform_5, window_bounds = array<i64: 2, 128>}]} {
    %c0_i32 = arith.constant 0 : i32
    %0 = arith.cmpi eq, %arg1, %c0_i32 : i32
    %1 = arith.extui %0 : i1 to i32
    %c0_i32_0 = arith.constant 0 : i32
    %2 = arith.cmpi ne, %1, %c0_i32_0 : i32
    scf.if %2 {
      %cst_17 = arith.constant 0.000000e+00 : f32
      %18 = vector.broadcast %cst_17 : f32 to vector<2x768xf32>
      %c0_18 = arith.constant 0 : index
      %c0_19 = arith.constant 0 : index
      %19 = vector.load %arg8[%c0_18, %c0_19] : memref<2x768xf32, #tpu.memory_space<vmem>>, vector<2x768xf32>
      tpu.vector_store %arg8[%c0_18, %c0_19], %18 {strides = array<i32>} : memref<2x768xf32, #tpu.memory_space<vmem>>, vector<2x768xf32>,
      %cst_20 = arith.constant 0.000000e+00 : f32
      %20 = vector.broadcast %cst_20 : f32 to vector<2x768xf32>
      %c0_21 = arith.constant 0 : index
      %c0_22 = arith.constant 0 : index
      %21 = vector.load %arg9[%c0_21, %c0_22] : memref<2x768xf32, #tpu.memory_space<vmem>>, vector<2x768xf32>
      tpu.vector_store %arg9[%c0_21, %c0_22], %20 {strides = array<i32>} : memref<2x768xf32, #tpu.memory_space<vmem>>, vector<2x768xf32>,
    } else {
    }
    %c0 = arith.constant 0 : index
    %c0_1 = arith.constant 0 : index
    %c0_2 = arith.constant 0 : index
    %3 = vector.load %arg2[%c0, %c0_1, %c0_2] : memref<2x8x768xbf16, #tpu.memory_space<vmem>>, vector<2x8x768xbf16>
    %4 = arith.extf %3 : vector<2x8x768xbf16> to vector<2x8x768xf32>
    %c0_3 = arith.constant 0 : index
    %c0_4 = arith.constant 0 : index
    %c0_5 = arith.constant 0 : index
    %5 = vector.load %arg3[%c0_3, %c0_4, %c0_5] : memref<2x8x768xbf16, #tpu.memory_space<vmem>>, vector<2x8x768xbf16>
    %6 = arith.extf %5 : vector<2x8x768xbf16> to vector<2x8x768xf32>
    %c0_6 = arith.constant 0 : index
    %c0_7 = arith.constant 0 : index
    %7 = vector.load %arg8[%c0_6, %c0_7] : memref<2x768xf32, #tpu.memory_space<vmem>>, vector<2x768xf32>
    %cst = arith.constant dense<0.000000e+00> : vector<2x768xf32>
    %8 = vector.multi_reduction <add>, %4, %cst [1] : vector<2x8x768xf32> to vector<2x768xf32>
    %9 = arith.addf %7, %8 : vector<2x768xf32>
    %c0_8 = arith.constant 0 : index
    %c0_9 = arith.constant 0 : index
    %10 = vector.load %arg8[%c0_8, %c0_9] : memref<2x768xf32, #tpu.memory_space<vmem>>, vector<2x768xf32>
    tpu.vector_store %arg8[%c0_8, %c0_9], %9 {strides = array<i32>} : memref<2x768xf32, #tpu.memory_space<vmem>>, vector<2x768xf32>,
    %c0_10 = arith.constant 0 : index
    %c0_11 = arith.constant 0 : index
    %11 = vector.load %arg9[%c0_10, %c0_11] : memref<2x768xf32, #tpu.memory_space<vmem>>, vector<2x768xf32>
    %cst_12 = arith.constant dense<0.000000e+00> : vector<2x768xf32>
    %12 = vector.multi_reduction <add>, %6, %cst_12 [1] : vector<2x8x768xf32> to vector<2x768xf32>
    %13 = arith.addf %11, %12 : vector<2x768xf32>
    %c0_13 = arith.constant 0 : index
    %c0_14 = arith.constant 0 : index
    %14 = vector.load %arg9[%c0_13, %c0_14] : memref<2x768xf32, #tpu.memory_space<vmem>>, vector<2x768xf32>
    tpu.vector_store %arg9[%c0_13, %c0_14], %13 {strides = array<i32>} : memref<2x768xf32, #tpu.memory_space<vmem>>, vector<2x768xf32>,
    %c0_i32_15 = arith.constant 0 : i32
    %15 = arith.cmpi eq, %arg1, %c0_i32_15 : i32
    %16 = arith.extui %15 : i1 to i32
    %c0_i32_16 = arith.constant 0 : i32
    %17 = arith.cmpi ne, %16, %c0_i32_16 : i32
    scf.if %17 {
      %c0_17 = arith.constant 0 : index
      %c0_18 = arith.constant 0 : index
      %18 = vector.load %arg8[%c0_17, %c0_18] : memref<2x768xf32, #tpu.memory_space<vmem>>, vector<2x768xf32>
      %cst_19 = arith.constant 1.250000e-01 : f32
      %19 = vector.broadcast %cst_19 : f32 to vector<2x768xf32>
      %20 = arith.mulf %18, %19 : vector<2x768xf32>
      %cst_20 = arith.constant 0.000000e+00 : f32
      %21 = vector.broadcast %cst_20 : f32 to vector<2x768xf32>
      %22 = arith.maximumf %20, %21 : vector<2x768xf32>
      %c0_21 = arith.constant 0 : index
      %c0_22 = arith.constant 0 : index
      %23 = vector.load %arg4[%c0_21, %c0_22] : memref<768x128xf32, #tpu.memory_space<vmem>>, vector<768x128xf32>
      %cst_23 = arith.constant dense<0.000000e+00> : vector<2x128xf32>
      %24 = tpu.matmul %22, %23, %cst_23 {dimension_numbers = #tpu.dot_dimension_numbers<[1], [0], [0], [1], [0, 0, 1, 1], [], []>} : vector<2x768xf32>, vector<768x128xf32>, vector<2x128xf32> -> vector<2x128xf32>
      %c0_24 = arith.constant 0 : index
      %c0_25 = arith.constant 0 : index
      %25 = vector.load %arg5[%c0_24, %c0_25] : memref<1x128xf32, #tpu.memory_space<vmem>>, vector<1x128xf32>
      %26 = vector.broadcast %25 : vector<1x128xf32> to vector<2x128xf32>
      %27 = arith.addf %24, %26 : vector<2x128xf32>
      %cst_26 = arith.constant 0.000000e+00 : f32
      %28 = vector.broadcast %cst_26 : f32 to vector<2x128xf32>
      %29 = arith.maximumf %27, %28 : vector<2x128xf32>
      %c0_27 = arith.constant 0 : index
      %c0_28 = arith.constant 0 : index
      %30 = vector.load %arg6[%c0_27, %c0_28] : memref<2x128xf32, #tpu.memory_space<vmem>>, vector<2x128xf32>
      tpu.vector_store %arg6[%c0_27, %c0_28], %29 {strides = array<i32>} : memref<2x128xf32, #tpu.memory_space<vmem>>, vector<2x128xf32>,
      %c0_29 = arith.constant 0 : index
      %c0_30 = arith.constant 0 : index
      %31 = vector.load %arg9[%c0_29, %c0_30] : memref<2x768xf32, #tpu.memory_space<vmem>>, vector<2x768xf32>
      %cst_31 = arith.constant 1.250000e-01 : f32
      %32 = vector.broadcast %cst_31 : f32 to vector<2x768xf32>
      %33 = arith.mulf %31, %32 : vector<2x768xf32>
      %cst_32 = arith.constant 0.000000e+00 : f32
      %34 = vector.broadcast %cst_32 : f32 to vector<2x768xf32>
      %35 = arith.maximumf %33, %34 : vector<2x768xf32>
      %c0_33 = arith.constant 0 : index
      %c0_34 = arith.constant 0 : index
      %36 = vector.load %arg4[%c0_33, %c0_34] : memref<768x128xf32, #tpu.memory_space<vmem>>, vector<768x128xf32>
      %cst_35 = arith.constant dense<0.000000e+00> : vector<2x128xf32>
      %37 = tpu.matmul %35, %36, %cst_35 {dimension_numbers = #tpu.dot_dimension_numbers<[1], [0], [0], [1], [0, 0, 1, 1], [], []>} : vector<2x768xf32>, vector<768x128xf32>, vector<2x128xf32> -> vector<2x128xf32>
      %c0_36 = arith.constant 0 : index
      %c0_37 = arith.constant 0 : index
      %38 = vector.load %arg5[%c0_36, %c0_37] : memref<1x128xf32, #tpu.memory_space<vmem>>, vector<1x128xf32>
      %39 = vector.broadcast %38 : vector<1x128xf32> to vector<2x128xf32>
      %40 = arith.addf %37, %39 : vector<2x128xf32>
      %cst_38 = arith.constant 0.000000e+00 : f32
      %41 = vector.broadcast %cst_38 : f32 to vector<2x128xf32>
      %42 = arith.maximumf %40, %41 : vector<2x128xf32>
      %c0_39 = arith.constant 0 : index
      %c0_40 = arith.constant 0 : index
      %43 = vector.load %arg7[%c0_39, %c0_40] : memref<2x128xf32, #tpu.memory_space<vmem>>, vector<2x128xf32>
      tpu.vector_store %arg7[%c0_39, %c0_40], %42 {strides = array<i32>} : memref<2x128xf32, #tpu.memory_space<vmem>>, vector<2x128xf32>,
    } else {
    }
    return
  }
  func.func @transform_0(%arg0: i32, %arg1: i32) -> (i32, i32, i32) {
    %c0_i32 = arith.constant 0 : i32
    %c0_i32_0 = arith.constant 0 : i32
    return %arg0, %arg1, %c0_i32 : i32, i32, i32
  }
  func.func @transform_1(%arg0: i32, %arg1: i32) -> (i32, i32, i32) {
    %c0_i32 = arith.constant 0 : i32
    %c0_i32_0 = arith.constant 0 : i32
    return %arg0, %arg1, %c0_i32 : i32, i32, i32
  }
  func.func @transform_2(%arg0: i32, %arg1: i32) -> (i32, i32) {
    %c0_i32 = arith.constant 0 : i32
    %c0_i32_0 = arith.constant 0 : i32
    %c0_i32_1 = arith.constant 0 : i32
    return %c0_i32, %c0_i32_0 : i32, i32
  }
  func.func @transform_3(%arg0: i32, %arg1: i32) -> (i32, i32) {
    %c0_i32 = arith.constant 0 : i32
    %c0_i32_0 = arith.constant 0 : i32
    %c0_i32_1 = arith.constant 0 : i32
    return %c0_i32, %c0_i32_0 : i32, i32
  }
  func.func @transform_4(%arg0: i32, %arg1: i32) -> (i32, i32) {
    %c0_i32 = arith.constant 0 : i32
    %c0_i32_0 = arith.constant 0 : i32
    return %arg0, %c0_i32 : i32, i32
  }
  func.func @transform_5(%arg0: i32, %arg1: i32) -> (i32, i32) {
    %c0_i32 = arith.constant 0 : i32
    %c0_i32_0 = arith.constant 0 : i32
    return %arg0, %c0_i32 : i32, i32
  }
}

</mosaic_0001>

<llo_original>
// kernel: tpu_custom_call.1
$region0: #{tpu_custom_call.1}
  #allocation0 [shape = 'u32[]', space=smem, size = 0x4, offset = 0x4, fixed_abs, tag = 'smem constant byte address 0x4 - core index']
  #allocation1 [shape = 'u32[144,128]{1,0:T(1,128)}', space=vmem, size = 0x12000, scoped, tag = 'internal scratch']
  #allocation2 [shape = 'f32[2,768]{1,0:T(2,128)}', space=vmem, size = 0x1800, scoped, tag = 'scratch operand']
  #allocation3 [shape = 'f32[2,768]{1,0:T(2,128)}', space=vmem, size = 0x1800, scoped, tag = 'scratch operand']
  %s0 = inlined_call_operand.hbm [shape: bf16[2,8,768], index: 0, kind: input, shape index: {}]
  %s1 = inlined_call_operand.hbm [shape: bf16[2,8,768], index: 1, kind: input, shape index: {}]
  %s2 = inlined_call_operand.hbm [shape: f32[768,128], index: 2, kind: input, shape index: {}]
  %s3 = inlined_call_operand.vmem [shape: f32[1,128], index: 3, kind: input, shape index: {}]
  %s4 = inlined_call_operand.hbm [shape: f32[2,128], index: 4, kind: output, shape index: {0}]
  %s5 = inlined_call_operand.hbm [shape: f32[2,128], index: 5, kind: output, shape index: {1}]
  %6 = xla_tuple %s4, %s5
  %s7 = sld [smem:[#allocation0]]
  $region54: #{tpu_custom_call.1} parent=0
    _
  %s9 = ssub.s32 1, %s7
  %s10 = scalar_select 0, %s9, %s7
  $region1: #{tpu_custom_call.1} parent=0
    #allocation4 [shape = 'u8[24576]{0}', space=vmem, size = 0x6000, scoped, tag = 'input window, operand 0, single buffered']
    #allocation5 [shape = 's32[1]{0}', space=sflag, size = 0x4, scoped, tag = 'scoped memory for tpu_custom_call.1']
    #allocation6 [shape = 's32[1]{0}', space=sflag, size = 0x4, scoped, tag = 'scoped memory for tpu_custom_call.1']
    #allocation7 [shape = 'u8[24576]{0}', space=vmem, size = 0x6000, scoped, tag = 'input window, operand 1, single buffered']
    #allocation8 [shape = 's32[1]{0}', space=sflag, size = 0x4, scoped, tag = 'scoped memory for tpu_custom_call.1']
    #allocation9 [shape = 'u8[393216]{0}', space=vmem, size = 0x60000, scoped, tag = 'input window, operand 2, single buffered']
    #allocation10 [shape = 'u8[1024]{0}', space=vmem, size = 0x400, scoped, tag = 'output window, operand 0, single buffered']
    #allocation11 [shape = 'u8[1024]{0}', space=vmem, size = 0x400, scoped, tag = 'output window, operand 1, single buffered']
    #allocation12 [shape = 's32[1]{0}', space=sflag, size = 0x4, scoped, tag = 'scoped memory for tpu_custom_call.1']
    %11 = vsyncpa [#allocation5], 0
    %12 = vsyncpa [#allocation8], 0
    %13 = vsyncpa [#allocation6], 0
    %14 = vsyncpa [#allocation12], 0
    // Predicated region
    $region2: #{tpu_custom_call.1} parent=1 // pred_check
      _
    $region3: #{tpu_custom_call.1} parent=1 // pred_check_branch
      %16 = sbr.rel (0) target = $region5
    $region4: #{tpu_custom_call.1} parent=1 // pred_region
      %s18 = ssub.s32 768, 768
      %19 = vsyncadd [#allocation5], %s18
      %s20 = sshll.u32 [#allocation4], 4
      %s21 = int_to_ptr.vmem [resolvable:$true] %s20
      %26 = dma.hbm_to_vmem [thread:$0]  %s0, 768, %s21, [#allocation5], 384, 384, 24
    $region5: #{tpu_custom_call.1} parent=1 // pred_fallthru
      _
    // Predicated region
    $region6: #{tpu_custom_call.1} parent=1 // pred_check
      _
    $region7: #{tpu_custom_call.1} parent=1 // pred_check_branch
      %28 = sbr.rel (0) target = $region9
    $region8: #{tpu_custom_call.1} parent=1 // pred_region
      %s30 = ssub.s32 768, 768
      %31 = vsyncadd [#allocation8], %s30
      %s32 = sshll.u32 [#allocation7], 4
      %s33 = int_to_ptr.vmem [resolvable:$true] %s32
      %38 = dma.hbm_to_vmem [thread:$0]  %s1, 768, %s33, [#allocation8], 384, 384, 24
    $region9: #{tpu_custom_call.1} parent=1 // pred_fallthru
      _
    // Predicated region
    $region10: #{tpu_custom_call.1} parent=1 // pred_check
      _
    $region11: #{tpu_custom_call.1} parent=1 // pred_check_branch
      %40 = sbr.rel (0) target = $region13
    $region12: #{tpu_custom_call.1} parent=1 // pred_region
      %s42 = ssub.s32 12288, 12288
      %43 = vsyncadd [#allocation8], %s42
      %s44 = sshll.u32 [#allocation9], 4
      %s45 = int_to_ptr.vmem [resolvable:$true] %s44
      %50 = dma.hbm_to_vmem [thread:$0]  %s2, 12288, %s45, [#allocation8], 128, 128, 8
    $region13: #{tpu_custom_call.1} parent=1 // pred_fallthru
      _
    // Predicated region
    $region14: #{tpu_custom_call.1} parent=1 // pred_check
      _
    $region15: #{tpu_custom_call.1} parent=1 // pred_check_branch
      %52 = sbr.rel (0) target = $region17
    $region16: #{tpu_custom_call.1} parent=1 // pred_region
      _
    $region17: #{tpu_custom_call.1} parent=1 // pred_fallthru
      _
    // Predicated region
    $region18: #{tpu_custom_call.1} parent=1 // pred_check
      _
    $region19: #{tpu_custom_call.1} parent=1 // pred_check_branch
      %54 = sbr.rel (0) target = $region21
    $region20: #{tpu_custom_call.1} parent=1 // pred_region
      %55 = dma.done [#allocation5], 768
    $region21: #{tpu_custom_call.1} parent=1 // pred_fallthru
      _
    // Predicated region
    $region22: #{tpu_custom_call.1} parent=1 // pred_check
      _
    $region23: #{tpu_custom_call.1} parent=1 // pred_check_branch
      %57 = sbr.rel (0) target = $region25
    $region24: #{tpu_custom_call.1} parent=1 // pred_region
      %58 = dma.done [#allocation8], 768
    $region25: #{tpu_custom_call.1} parent=1 // pred_fallthru
      _
    // Predicated region
    $region26: #{tpu_custom_call.1} parent=1 // pred_check
      _
    $region27: #{tpu_custom_call.1} parent=1 // pred_check_branch
      %60 = sbr.rel (0) target = $region29
    $region28: #{tpu_custom_call.1} parent=1 // pred_region
      %61 = dma.done [#allocation8], 12288
    $region29: #{tpu_custom_call.1} parent=1 // pred_fallthru
      _
    %p62 = scmp.eq.s32.totalorder 0, 0
    // Predicated region
    $region30: #{tpu_custom_call.1} parent=1 // pred_check
      %p63 = pneg %p62
    $region31: #{tpu_custom_call.1} parent=1 // pred_check_branch
      %65 = sbr.rel (%p63) target = $region33
    $region32: #{tpu_custom_call.1} parent=1 // pred_region
      %66 = vst [vmem:[#allocation2] sm:$0xff] 0.0
      %67 = vst [vmem:[#allocation2 + $0x8] sm:$0xf] 0.0
      %68 = vst [vmem:[#allocation3] sm:$0xff] 0.0
      %69 = vst [vmem:[#allocation3 + $0x8] sm:$0xf] 0.0
    $region33: #{tpu_custom_call.1} parent=1 // pred_fallthru
      _
    %v70 = vld [vmem:[#allocation4] sm:$0xff]
    %v71 = vld [vmem:[#allocation4 + $0x8] sm:$0xff]
    %v72 = vld [vmem:[#allocation4 + $0x10] sm:$0xff]
    %v73 = vld [vmem:[#allocation4 + $0x18] sm:$0xff]
    %v74 = vld [vmem:[#allocation4 + $0x20] sm:$0xff]
    %v75 = vld [vmem:[#allocation4 + $0x28] sm:$0xff]
    %v76 = vunpack.c.l.bf16 %v70
    %v77 = vunpack.c.h.bf16 %v70
    %v78 = vunpack.c.l.bf16 %v71
    %v79 = vunpack.c.h.bf16 %v71
    %v80 = vunpack.c.l.bf16 %v72
    %v81 = vunpack.c.h.bf16 %v72
    %v82 = vunpack.c.l.bf16 %v73
    %v83 = vunpack.c.h.bf16 %v73
    %v84 = vunpack.c.l.bf16 %v74
    %v85 = vunpack.c.h.bf16 %v74
    %v86 = vunpack.c.l.bf16 %v75
    %v87 = vunpack.c.h.bf16 %v75
    %v88 = vld [vmem:[#allocation7] sm:$0xff]
    %v89 = vld [vmem:[#allocation7 + $0x8] sm:$0xff]
    %v90 = vld [vmem:[#allocation7 + $0x10] sm:$0xff]
    %v91 = vld [vmem:[#allocation7 + $0x18] sm:$0xff]
    %v92 = vld [vmem:[#allocation7 + $0x20] sm:$0xff]
    %v93 = vld [vmem:[#allocation7 + $0x28] sm:$0xff]
    %v94 = vunpack.c.l.bf16 %v88
    %v95 = vunpack.c.h.bf16 %v88
    %v96 = vunpack.c.l.bf16 %v89
    %v97 = vunpack.c.h.bf16 %v89
    %v98 = vunpack.c.l.bf16 %v90
    %v99 = vunpack.c.h.bf16 %v90
    %v100 = vunpack.c.l.bf16 %v91
    %v101 = vunpack.c.h.bf16 %v91
    %v102 = vunpack.c.l.bf16 %v92
    %v103 = vunpack.c.h.bf16 %v92
    %v104 = vunpack.c.l.bf16 %v93
    %v105 = vunpack.c.h.bf16 %v93
    %v106 = vld [vmem:[#allocation2] sm:$0xff]
    %v107 = vld [vmem:[#allocation2 + $0x8] sm:$0xf]
    %v108 = vrot.slane %v76, 4
    %v109 = vadd.f32 %v76, %v108
    %v110 = vrot.slane %v109, 2
    %v111 = vadd.f32 %v109, %v110
    %v112 = vrot.slane %v111, 1
    %v113 = vadd.f32 %v111, %v112
    %v114 = vrot.slane %v77, 4
    %v115 = vadd.f32 %v77, %v114
    %v116 = vrot.slane %v115, 2
    %v117 = vadd.f32 %v115, %v116
    %v118 = vrot.slane %v117, 1
    %v119 = vadd.f32 %v117, %v118
    %v120 = vrot.slane %v78, 4
    %v121 = vadd.f32 %v78, %v120
    %v122 = vrot.slane %v121, 2
    %v123 = vadd.f32 %v121, %v122
    %v124 = vrot.slane %v123, 1
    %v125 = vadd.f32 %v123, %v124
    %v126 = vrot.slane %v79, 4
    %v127 = vadd.f32 %v79, %v126
    %v128 = vrot.slane %v127, 2
    %v129 = vadd.f32 %v127, %v128
    %v130 = vrot.slane %v129, 1
    %v131 = vadd.f32 %v129, %v130
    %v132 = vrot.slane %v80, 4
    %v133 = vadd.f32 %v80, %v132
    %v134 = vrot.slane %v133, 2
    %v135 = vadd.f32 %v133, %v134
    %v136 = vrot.slane %v135, 1
    %v137 = vadd.f32 %v135, %v136
    %v138 = vrot.slane %v81, 4
    %v139 = vadd.f32 %v81, %v138
    %v140 = vrot.slane %v139, 2
    %v141 = vadd.f32 %v139, %v140
    %v142 = vrot.slane %v141, 1
    %v143 = vadd.f32 %v141, %v142
    %v144 = vrot.slane %v82, 4
    %v145 = vadd.f32 %v82, %v144
    %v146 = vrot.slane %v145, 2
    %v147 = vadd.f32 %v145, %v146
    %v148 = vrot.slane %v147, 1
    %v149 = vadd.f32 %v147, %v148
    %v150 = vrot.slane %v83, 4
    %v151 = vadd.f32 %v83, %v150
    %v152 = vrot.slane %v151, 2
    %v153 = vadd.f32 %v151, %v152
    %v154 = vrot.slane %v153, 1
    %v155 = vadd.f32 %v153, %v154
    %v156 = vrot.slane %v84, 4
    %v157 = vadd.f32 %v84, %v156
    %v158 = vrot.slane %v157, 2
    %v159 = vadd.f32 %v157, %v158
    %v160 = vrot.slane %v159, 1
    %v161 = vadd.f32 %v159, %v160
    %v162 = vrot.slane %v85, 4
    %v163 = vadd.f32 %v85, %v162
    %v164 = vrot.slane %v163, 2
    %v165 = vadd.f32 %v163, %v164
    %v166 = vrot.slane %v165, 1
    %v167 = vadd.f32 %v165, %v166
    %v168 = vrot.slane %v86, 4
    %v169 = vadd.f32 %v86, %v168
    %v170 = vrot.slane %v169, 2
    %v171 = vadd.f32 %v169, %v170
    %v172 = vrot.slane %v171, 1
    %v173 = vadd.f32 %v171, %v172
    %v174 = vrot.slane %v87, 4
    %v175 = vadd.f32 %v87, %v174
    %v176 = vrot.slane %v175, 2
    %v177 = vadd.f32 %v175, %v176
    %v178 = vrot.slane %v177, 1
    %v179 = vadd.f32 %v177, %v178
    %v192 = vcombine.low %v113, %v119
    %v193 = vcombine.low %v125, %v131
    %v195 = vunpack.c.l.s4 1983009808
    %v196 = vunpack.c.0.s8 %v195
    %v197 = vlaneseq
    %v198 = vshrl.u32 %v197, 7
    %v199 = vsub.s32 %v196, %v198
    %v200 = vrot.slane %v192, %v199
    %v202 = vunpack.c.l.s4 1983009808
    %v203 = vunpack.c.0.s8 %v202
    %v204 = vlaneseq
    %v205 = vshrl.u32 %v204, 7
    %v206 = vsub.s32 %v203, %v205
    %v207 = vrot.slane %v193, %v206
    %v208 = vcombine.low %v200, %v207
    %v209 = vcombine.low %v137, %v143
    %v211 = vunpack.c.l.s4 1983009808
    %v212 = vunpack.c.0.s8 %v211
    %v213 = vlaneseq
    %v214 = vshrl.u32 %v213, 7
    %v215 = vsub.s32 %v212, %v214
    %v216 = vrot.slane %v209, %v215
    %v217 = vcombine.low %v149, %v155
    %v218 = vcombine.low %v161, %v167
    %v220 = vunpack.c.l.s4 1983009808
    %v221 = vunpack.c.0.s8 %v220
    %v222 = vlaneseq
    %v223 = vshrl.u32 %v222, 7
    %v224 = vsub.s32 %v221, %v223
    %v225 = vrot.slane %v217, %v224
    %v227 = vunpack.c.l.s4 1983009808
    %v228 = vunpack.c.0.s8 %v227
    %v229 = vlaneseq
    %v230 = vshrl.u32 %v229, 7
    %v231 = vsub.s32 %v228, %v230
    %v232 = vrot.slane %v218, %v231
    %v233 = vcombine.low %v225, %v232
    %v234 = vcombine.low %v173, %v179
    %v236 = vunpack.c.l.s4 1983009808
    %v237 = vunpack.c.0.s8 %v236
    %v238 = vlaneseq
    %v239 = vshrl.u32 %v238, 7
    %v240 = vsub.s32 %v237, %v239
    %v241 = vrot.slane %v234, %v240
    %vm242 = vcmask 1044484
    %v243 = vsel %vm242, %v208, %v208
    %vm244 = vcmask 1046534
    %v245 = vsel %vm244, %v208, %v243
    %v246 = vrot.slane %v233, 7
    %vm247 = vcmask 1041409
    %v248 = vsel %vm247, %v246, %v245
    %vm249 = vcmask 1043459
    %v250 = vsel %vm249, %v246, %v248
    %vm251 = vcmask 1045509
    %v252 = vsel %vm251, %v246, %v250
    %vm253 = vcmask 1047559
    %v254 = vsel %vm253, %v246, %v252
    %v255 = vsel %vm242, %v216, %v216
    %v256 = vsel %vm244, %v216, %v255
    %v257 = vrot.slane %v241, 7
    %v258 = vsel %vm247, %v257, %v256
    %v259 = vsel %vm249, %v257, %v258
    %v260 = vsel %vm251, %v257, %v259
    %v261 = vsel %vm253, %v257, %v260
    %v264 = vadd.f32 %v106, %v254
    %v265 = vadd.f32 %v107, %v261
    %266 = vst [vmem:[#allocation2] sm:$0xff] %v264
    %267 = vst [vmem:[#allocation2 + $0x8] sm:$0xf] %v265
    %v268 = vld [vmem:[#allocation3] sm:$0xff]
    %v269 = vld [vmem:[#allocation3 + $0x8] sm:$0xf]
    %v270 = vrot.slane %v94, 4
    %v271 = vadd.f32 %v94, %v270
    %v272 = vrot.slane %v271, 2
    %v273 = vadd.f32 %v271, %v272
    %v274 = vrot.slane %v273, 1
    %v275 = vadd.f32 %v273, %v274
    %v276 = vrot.slane %v95, 4
    %v277 = vadd.f32 %v95, %v276
    %v278 = vrot.slane %v277, 2
    %v279 = vadd.f32 %v277, %v278
    %v280 = vrot.slane %v279, 1
    %v281 = vadd.f32 %v279, %v280
    %v282 = vrot.slane %v96, 4
    %v283 = vadd.f32 %v96, %v282
    %v284 = vrot.slane %v283, 2
    %v285 = vadd.f32 %v283, %v284
    %v286 = vrot.slane %v285, 1
    %v287 = vadd.f32 %v285, %v286
    %v288 = vrot.slane %v97, 4
    %v289 = vadd.f32 %v97, %v288
    %v290 = vrot.slane %v289, 2
    %v291 = vadd.f32 %v289, %v290
    %v292 = vrot.slane %v291, 1
    %v293 = vadd.f32 %v291, %v292
    %v294 = vrot.slane %v98, 4
    %v295 = vadd.f32 %v98, %v294
    %v296 = vrot.slane %v295, 2
    %v297 = vadd.f32 %v295, %v296
    %v298 = vrot.slane %v297, 1
    %v299 = vadd.f32 %v297, %v298
    %v300 = vrot.slane %v99, 4
    %v301 = vadd.f32 %v99, %v300
    %v302 = vrot.slane %v301, 2
    %v303 = vadd.f32 %v301, %v302
    %v304 = vrot.slane %v303, 1
    %v305 = vadd.f32 %v303, %v304
    %v306 = vrot.slane %v100, 4
    %v307 = vadd.f32 %v100, %v306
    %v308 = vrot.slane %v307, 2
    %v309 = vadd.f32 %v307, %v308
    %v310 = vrot.slane %v309, 1
    %v311 = vadd.f32 %v309, %v310
    %v312 = vrot.slane %v101, 4
    %v313 = vadd.f32 %v101, %v312
    %v314 = vrot.slane %v313, 2
    %v315 = vadd.f32 %v313, %v314
    %v316 = vrot.slane %v315, 1
    %v317 = vadd.f32 %v315, %v316
    %v318 = vrot.slane %v102, 4
    %v319 = vadd.f32 %v102, %v318
    %v320 = vrot.slane %v319, 2
    %v321 = vadd.f32 %v319, %v320
    %v322 = vrot.slane %v321, 1
    %v323 = vadd.f32 %v321, %v322
    %v324 = vrot.slane %v103, 4
    %v325 = vadd.f32 %v103, %v324
    %v326 = vrot.slane %v325, 2
    %v327 = vadd.f32 %v325, %v326
    %v328 = vrot.slane %v327, 1
    %v329 = vadd.f32 %v327, %v328
    %v330 = vrot.slane %v104, 4
    %v331 = vadd.f32 %v104, %v330
    %v332 = vrot.slane %v331, 2
    %v333 = vadd.f32 %v331, %v332
    %v334 = vrot.slane %v333, 1
    %v335 = vadd.f32 %v333, %v334
    %v336 = vrot.slane %v105, 4
    %v337 = vadd.f32 %v105, %v336
    %v338 = vrot.slane %v337, 2
    %v339 = vadd.f32 %v337, %v338
    %v340 = vrot.slane %v339, 1
    %v341 = vadd.f32 %v339, %v340
    %v354 = vcombine.low %v275, %v281
    %v355 = vcombine.low %v287, %v293
    %v357 = vunpack.c.l.s4 1983009808
    %v358 = vunpack.c.0.s8 %v357
    %v359 = vlaneseq
    %v360 = vshrl.u32 %v359, 7
    %v361 = vsub.s32 %v358, %v360
    %v362 = vrot.slane %v354, %v361
    %v364 = vunpack.c.l.s4 1983009808
    %v365 = vunpack.c.0.s8 %v364
    %v366 = vlaneseq
    %v367 = vshrl.u32 %v366, 7
    %v368 = vsub.s32 %v365, %v367
    %v369 = vrot.slane %v355, %v368
    %v370 = vcombine.low %v362, %v369
    %v371 = vcombine.low %v299, %v305
    %v373 = vunpack.c.l.s4 1983009808
    %v374 = vunpack.c.0.s8 %v373
    %v375 = vlaneseq
    %v376 = vshrl.u32 %v375, 7
    %v377 = vsub.s32 %v374, %v376
    %v378 = vrot.slane %v371, %v377
    %v379 = vcombine.low %v311, %v317
    %v380 = vcombine.low %v323, %v329
    %v382 = vunpack.c.l.s4 1983009808
    %v383 = vunpack.c.0.s8 %v382
    %v384 = vlaneseq
    %v385 = vshrl.u32 %v384, 7
    %v386 = vsub.s32 %v383, %v385
    %v387 = vrot.slane %v379, %v386
    %v389 = vunpack.c.l.s4 1983009808
    %v390 = vunpack.c.0.s8 %v389
    %v391 = vlaneseq
    %v392 = vshrl.u32 %v391, 7
    %v393 = vsub.s32 %v390, %v392
    %v394 = vrot.slane %v380, %v393
    %v395 = vcombine.low %v387, %v394
    %v396 = vcombine.low %v335, %v341
    %v398 = vunpack.c.l.s4 1983009808
    %v399 = vunpack.c.0.s8 %v398
    %v400 = vlaneseq
    %v401 = vshrl.u32 %v400, 7
    %v402 = vsub.s32 %v399, %v401
    %v403 = vrot.slane %v396, %v402
    %v404 = vsel %vm242, %v370, %v370
    %v405 = vsel %vm244, %v370, %v404
    %v406 = vrot.slane %v395, 7
    %v407 = vsel %vm247, %v406, %v405
    %v408 = vsel %vm249, %v406, %v407
    %v409 = vsel %vm251, %v406, %v408
    %v410 = vsel %vm253, %v406, %v409
    %v411 = vsel %vm242, %v378, %v378
    %v412 = vsel %vm244, %v378, %v411
    %v413 = vrot.slane %v403, 7
    %v414 = vsel %vm247, %v413, %v412
    %v415 = vsel %vm249, %v413, %v414
    %v416 = vsel %vm251, %v413, %v415
    %v417 = vsel %vm253, %v413, %v416
    %v420 = vadd.f32 %v268, %v410
    %v421 = vadd.f32 %v269, %v417
    %422 = vst [vmem:[#allocation3] sm:$0xff] %v420
    %423 = vst [vmem:[#allocation3 + $0x8] sm:$0xf] %v421
    // Predicated region
    $region34: #{tpu_custom_call.1} parent=1 // pred_check
      %p424 = pneg %p62
    $region35: #{tpu_custom_call.1} parent=1 // pred_check_branch
      %426 = sbr.rel (%p424) target = $region37
    $region36: #{tpu_custom_call.1} parent=1 // pred_region
      %v427 = vld [vmem:[#allocation2] sm:$0xff]
      %v428 = vld [vmem:[#allocation2 + $0x8] sm:$0xf]
      %v429 = vmul.f32 %v427, 0.125
      %v430 = vmul.f32 %v428, 0.125
      %v431 = vmax.f32 %v429, 0.0
      %v432 = vmax.f32 %v430, 0.0
      %v433 = vld [vmem:[#allocation9] sm:$0xff]
      %v434 = vld [vmem:[#allocation9 + $0x8] sm:$0xff]
      %v435 = vld [vmem:[#allocation9 + $0x10] sm:$0xff]
      %v436 = vld [vmem:[#allocation9 + $0x18] sm:$0xff]
      %v437 = vld [vmem:[#allocation9 + $0x20] sm:$0xff]
      %v438 = vld [vmem:[#allocation9 + $0x28] sm:$0xff]
      %v439 = vld [vmem:[#allocation9 + $0x30] sm:$0xff]
      %v440 = vld [vmem:[#allocation9 + $0x38] sm:$0xff]
      %v441 = vld [vmem:[#allocation9 + $0x40] sm:$0xff]
      %v442 = vld [vmem:[#allocation9 + $0x48] sm:$0xff]
      %v443 = vld [vmem:[#allocation9 + $0x50] sm:$0xff]
      %v444 = vld [vmem:[#allocation9 + $0x58] sm:$0xff]
      %v445 = vld [vmem:[#allocation9 + $0x60] sm:$0xff]
      %v446 = vld [vmem:[#allocation9 + $0x68] sm:$0xff]
      %v447 = vld [vmem:[#allocation9 + $0x70] sm:$0xff]
      %v448 = vld [vmem:[#allocation9 + $0x78] sm:$0xff]
      %v449 = vld [vmem:[#allocation9 + $0x80] sm:$0xff]
      %v450 = vld [vmem:[#allocation9 + $0x88] sm:$0xff]
      %v451 = vld [vmem:[#allocation9 + $0x90] sm:$0xff]
      %v452 = vld [vmem:[#allocation9 + $0x98] sm:$0xff]
      %v453 = vld [vmem:[#allocation9 + $0xa0] sm:$0xff]
      %v454 = vld [vmem:[#allocation9 + $0xa8] sm:$0xff]
      %v455 = vld [vmem:[#allocation9 + $0xb0] sm:$0xff]
      %v456 = vld [vmem:[#allocation9 + $0xb8] sm:$0xff]
      %v457 = vld [vmem:[#allocation9 + $0xc0] sm:$0xff]
      %v458 = vld [vmem:[#allocation9 + $0xc8] sm:$0xff]
      %v459 = vld [vmem:[#allocation9 + $0xd0] sm:$0xff]
      %v460 = vld [vmem:[#allocation9 + $0xd8] sm:$0xff]
      %v461 = vld [vmem:[#allocation9 + $0xe0] sm:$0xff]
      %v462 = vld [vmem:[#allocation9 + $0xe8] sm:$0xff]
      %v463 = vld [vmem:[#allocation9 + $0xf0] sm:$0xff]
      %v464 = vld [vmem:[#allocation9 + $0xf8] sm:$0xff]
      %v465 = vld [vmem:[#allocation9 + $0x100] sm:$0xff]
      %v466 = vld [vmem:[#allocation9 + $0x108] sm:$0xff]
      %v467 = vld [vmem:[#allocation9 + $0x110] sm:$0xff]
      %v468 = vld [vmem:[#allocation9 + $0x118] sm:$0xff]
      %v469 = vld [vmem:[#allocation9 + $0x120] sm:$0xff]
      %v470 = vld [vmem:[#allocation9 + $0x128] sm:$0xff]
      %v471 = vld [vmem:[#allocation9 + $0x130] sm:$0xff]
      %v472 = vld [vmem:[#allocation9 + $0x138] sm:$0xff]
      %v473 = vld [vmem:[#allocation9 + $0x140] sm:$0xff]
      %v474 = vld [vmem:[#allocation9 + $0x148] sm:$0xff]
      %v475 = vld [vmem:[#allocation9 + $0x150] sm:$0xff]
      %v476 = vld [vmem:[#allocation9 + $0x158] sm:$0xff]
      %v477 = vld [vmem:[#allocation9 + $0x160] sm:$0xff]
      %v478 = vld [vmem:[#allocation9 + $0x168] sm:$0xff]
      %v479 = vld [vmem:[#allocation9 + $0x170] sm:$0xff]
      %v480 = vld [vmem:[#allocation9 + $0x178] sm:$0xff]
      %v481 = vld [vmem:[#allocation9 + $0x180] sm:$0xff]
      %v482 = vld [vmem:[#allocation9 + $0x188] sm:$0xff]
      %v483 = vld [vmem:[#allocation9 + $0x190] sm:$0xff]
      %v484 = vld [vmem:[#allocation9 + $0x198] sm:$0xff]
      %v485 = vld [vmem:[#allocation9 + $0x1a0] sm:$0xff]
      %v486 = vld [vmem:[#allocation9 + $0x1a8] sm:$0xff]
      %v487 = vld [vmem:[#allocation9 + $0x1b0] sm:$0xff]
      %v488 = vld [vmem:[#allocation9 + $0x1b8] sm:$0xff]
      %v489 = vld [vmem:[#allocation9 + $0x1c0] sm:$0xff]
      %v490 = vld [vmem:[#allocation9 + $0x1c8] sm:$0xff]
      %v491 = vld [vmem:[#allocation9 + $0x1d0] sm:$0xff]
      %v492 = vld [vmem:[#allocation9 + $0x1d8] sm:$0xff]
      %v493 = vld [vmem:[#allocation9 + $0x1e0] sm:$0xff]
      %v494 = vld [vmem:[#allocation9 + $0x1e8] sm:$0xff]
      %v495 = vld [vmem:[#allocation9 + $0x1f0] sm:$0xff]
      %v496 = vld [vmem:[#allocation9 + $0x1f8] sm:$0xff]
      %v497 = vld [vmem:[#allocation9 + $0x200] sm:$0xff]
      %v498 = vld [vmem:[#allocation9 + $0x208] sm:$0xff]
      %v499 = vld [vmem:[#allocation9 + $0x210] sm:$0xff]
      %v500 = vld [vmem:[#allocation9 + $0x218] sm:$0xff]
      %v501 = vld [vmem:[#allocation9 + $0x220] sm:$0xff]
      %v502 = vld [vmem:[#allocation9 + $0x228] sm:$0xff]
      %v503 = vld [vmem:[#allocation9 + $0x230] sm:$0xff]
      %v504 = vld [vmem:[#allocation9 + $0x238] sm:$0xff]
      %v505 = vld [vmem:[#allocation9 + $0x240] sm:$0xff]
      %v506 = vld [vmem:[#allocation9 + $0x248] sm:$0xff]
      %v507 = vld [vmem:[#allocation9 + $0x250] sm:$0xff]
      %v508 = vld [vmem:[#allocation9 + $0x258] sm:$0xff]
      %v509 = vld [vmem:[#allocation9 + $0x260] sm:$0xff]
      %v510 = vld [vmem:[#allocation9 + $0x268] sm:$0xff]
      %v511 = vld [vmem:[#allocation9 + $0x270] sm:$0xff]
      %v512 = vld [vmem:[#allocation9 + $0x278] sm:$0xff]
      %v513 = vld [vmem:[#allocation9 + $0x280] sm:$0xff]
      %v514 = vld [vmem:[#allocation9 + $0x288] sm:$0xff]
      %v515 = vld [vmem:[#allocation9 + $0x290] sm:$0xff]
      %v516 = vld [vmem:[#allocation9 + $0x298] sm:$0xff]
      %v517 = vld [vmem:[#allocation9 + $0x2a0] sm:$0xff]
      %v518 = vld [vmem:[#allocation9 + $0x2a8] sm:$0xff]
      %v519 = vld [vmem:[#allocation9 + $0x2b0] sm:$0xff]
      %v520 = vld [vmem:[#allocation9 + $0x2b8] sm:$0xff]
      %v521 = vld [vmem:[#allocation9 + $0x2c0] sm:$0xff]
      %v522 = vld [vmem:[#allocation9 + $0x2c8] sm:$0xff]
      %v523 = vld [vmem:[#allocation9 + $0x2d0] sm:$0xff]
      %v524 = vld [vmem:[#allocation9 + $0x2d8] sm:$0xff]
      %v525 = vld [vmem:[#allocation9 + $0x2e0] sm:$0xff]
      %v526 = vld [vmem:[#allocation9 + $0x2e8] sm:$0xff]
      %v527 = vld [vmem:[#allocation9 + $0x2f0] sm:$0xff]
      %v528 = vld [vmem:[#allocation9 + $0x2f8] sm:$0xff]
      %v529 = vld [vmem:[%s3] sm:$0x1]
      %v531 = vlaneseq
      %v532 = vshrl.u32 %v531, 7
      %v533 = vsub.s32 0, %v532
      %v534 = vrot.slane %v529, %v533
      %v538 = vcombine.high %v431, %v431
      %v540 = vunpack.c.l.s4 1983009808
      %v541 = vunpack.c.0.s8 %v540
      %v542 = vlaneseq
      %v543 = vshrl.u32 %v542, 7
      %v544 = vsub.s32 %v541, %v543
      %v545 = vrot.slane %v431, %v544
      %v547 = vunpack.c.l.s4 1983009808
      %v548 = vunpack.c.0.s8 %v547
      %v549 = vlaneseq
      %v550 = vshrl.u32 %v549, 7
      %v551 = vsub.s32 %v548, %v550
      %v552 = vrot.slane %v538, %v551
      %v553 = vcombine.high %v545, %v545
      %v554 = vcombine.high %v552, %v552
      %v556 = vunpack.c.l.s4 1983009808
      %v557 = vunpack.c.0.s8 %v556
      %v558 = vlaneseq
      %v559 = vshrl.u32 %v558, 7
      %v560 = vsub.s32 %v557, %v559
      %v561 = vrot.slane %v432, %v560
      %v562 = vcombine.high %v561, %v561
      %569 = vmatprep.subr.mxu0 0.0
      %570 = vmatpush1.msra.mxu0 %v448
      %571 = vmatprep.subr.mxu0 0.0
      %572 = vmatpush1.msra.mxu0 %v447
      %573 = vmatprep.subr.mxu0 0.0
      %574 = vmatpush1.msra.mxu0 %v446
      %575 = vmatprep.subr.mxu0 0.0
      %576 = vmatpush1.msra.mxu0 %v445
      %577 = vmatprep.subr.mxu0 0.0
      %578 = vmatpush1.msra.mxu0 %v444
      %579 = vmatprep.subr.mxu0 0.0
      %580 = vmatpush1.msra.mxu0 %v443
      %581 = vmatprep.subr.mxu0 0.0
      %582 = vmatpush1.msra.mxu0 %v442
      %583 = vmatprep.subr.mxu0 0.0
      %584 = vmatpush1.msra.mxu0 %v441
      %585 = vmatprep.subr.mxu0 0.0
      %586 = vmatpush1.msra.mxu0 %v440
      %587 = vmatprep.subr.mxu0 0.0
      %588 = vmatpush1.msra.mxu0 %v439
      %589 = vmatprep.subr.mxu0 0.0
      %590 = vmatpush1.msra.mxu0 %v438
      %591 = vmatprep.subr.mxu0 0.0
      %592 = vmatpush1.msra.mxu0 %v437
      %593 = vmatprep.subr.mxu0 0.0
      %594 = vmatpush1.msra.mxu0 %v436
      %595 = vmatprep.subr.mxu0 0.0
      %596 = vmatpush1.msra.mxu0 %v435
      %597 = vmatprep.subr.mxu0 0.0
      %598 = vmatpush1.msra.mxu0 %v434
      %599 = vmatprep.subr.mxu0 0.0
      %600 = vmatpush1.msra.mxu0 %v433
      %601 = vmatprep.subr.mxu0 0.0
      %602 = vmatpush2.msra.mxu0 %v464
      %603 = vmatprep.subr.mxu0 0.0
      %604 = vmatpush2.msra.mxu0 %v463
      %605 = vmatprep.subr.mxu0 0.0
      %606 = vmatpush2.msra.mxu0 %v462
      %607 = vmatprep.subr.mxu0 0.0
      %608 = vmatpush2.msra.mxu0 %v461
      %609 = vmatprep.subr.mxu0 0.0
      %610 = vmatpush2.msra.mxu0 %v460
      %611 = vmatprep.subr.mxu0 0.0
      %612 = vmatpush2.msra.mxu0 %v459
      %613 = vmatprep.subr.mxu0 0.0
      %614 = vmatpush2.msra.mxu0 %v458
      %615 = vmatprep.subr.mxu0 0.0
      %616 = vmatpush2.msra.mxu0 %v457
      %617 = vmatprep.subr.mxu0 0.0
      %618 = vmatpush2.msra.mxu0 %v456
      %619 = vmatprep.subr.mxu0 0.0
      %620 = vmatpush2.msra.mxu0 %v455
      %621 = vmatprep.subr.mxu0 0.0
      %622 = vmatpush2.msra.mxu0 %v454
      %623 = vmatprep.subr.mxu0 0.0
      %624 = vmatpush2.msra.mxu0 %v453
      %625 = vmatprep.subr.mxu0 0.0
      %626 = vmatpush2.msra.mxu0 %v452
      %627 = vmatprep.subr.mxu0 0.0
      %628 = vmatpush2.msra.mxu0 %v451
      %629 = vmatprep.subr.mxu0 0.0
      %630 = vmatpush2.msra.mxu0 %v450
      %631 = vmatprep.subr.mxu0 0.0
      %632 = vmatpush2.msra.mxu0 %v449
      %633 = vmatprep.mubr.f32.mxu0 %v553
      %634 = vmatmul.mubr.f32.gmra.mxu0 %v545
      %v635 = vpop.f32.mrf.mxu0
      %v636 = vadd.f32 %v534, %v635
      %v637 = vpop.f32.mrf.mxu0
      %638 = vdwg.mxu0
      %639 = vmatprep.subr.mxu0 0.0
      %640 = vmatpush1.msra.mxu0 %v480
      %641 = vmatprep.subr.mxu0 0.0
      %642 = vmatpush1.msra.mxu0 %v479
      %643 = vmatprep.subr.mxu0 0.0
      %644 = vmatpush1.msra.mxu0 %v478
      %645 = vmatprep.subr.mxu0 0.0
      %646 = vmatpush1.msra.mxu0 %v477
      %647 = vmatprep.subr.mxu0 0.0
      %648 = vmatpush1.msra.mxu0 %v476
      %649 = vmatprep.subr.mxu0 0.0
      %650 = vmatpush1.msra.mxu0 %v475
      %651 = vmatprep.subr.mxu0 0.0
      %652 = vmatpush1.msra.mxu0 %v474
      %653 = vmatprep.subr.mxu0 0.0
      %654 = vmatpush1.msra.mxu0 %v473
      %655 = vmatprep.subr.mxu0 0.0
      %656 = vmatpush1.msra.mxu0 %v472
      %657 = vmatprep.subr.mxu0 0.0
      %658 = vmatpush1.msra.mxu0 %v471
      %659 = vmatprep.subr.mxu0 0.0
      %660 = vmatpush1.msra.mxu0 %v470
      %661 = vmatprep.subr.mxu0 0.0
      %662 = vmatpush1.msra.mxu0 %v469
      %663 = vmatprep.subr.mxu0 0.0
      %664 = vmatpush1.msra.mxu0 %v468
      %665 = vmatprep.subr.mxu0 0.0
      %666 = vmatpush1.msra.mxu0 %v467
      %667 = vmatprep.subr.mxu0 0.0
      %668 = vmatpush1.msra.mxu0 %v466
      %669 = vmatprep.subr.mxu0 0.0
      %670 = vmatpush1.msra.mxu0 %v465
      %671 = vmatprep.subr.mxu0 0.0
      %672 = vmatpush2.msra.mxu0 %v496
      %673 = vmatprep.subr.mxu0 0.0
      %674 = vmatpush2.msra.mxu0 %v495
      %675 = vmatprep.subr.mxu0 0.0
      %676 = vmatpush2.msra.mxu0 %v494
      %677 = vmatprep.subr.mxu0 0.0
      %678 = vmatpush2.msra.mxu0 %v493
      %679 = vmatprep.subr.mxu0 0.0
      %680 = vmatpush2.msra.mxu0 %v492
      %681 = vmatprep.subr.mxu0 0.0
      %682 = vmatpush2.msra.mxu0 %v491
      %683 = vmatprep.subr.mxu0 0.0
      %684 = vmatpush2.msra.mxu0 %v490
      %685 = vmatprep.subr.mxu0 0.0
      %686 = vmatpush2.msra.mxu0 %v489
      %687 = vmatprep.subr.mxu0 0.0
      %688 = vmatpush2.msra.mxu0 %v488
      %689 = vmatprep.subr.mxu0 0.0
      %690 = vmatpush2.msra.mxu0 %v487
      %691 = vmatprep.subr.mxu0 0.0
      %692 = vmatpush2.msra.mxu0 %v486
      %693 = vmatprep.subr.mxu0 0.0
      %694 = vmatpush2.msra.mxu0 %v485
      %695 = vmatprep.subr.mxu0 0.0
      %696 = vmatpush2.msra.mxu0 %v484
      %697 = vmatprep.subr.mxu0 0.0
      %698 = vmatpush2.msra.mxu0 %v483
      %699 = vmatprep.subr.mxu0 0.0
      %700 = vmatpush2.msra.mxu0 %v482
      %701 = vmatprep.subr.mxu0 0.0
      %702 = vmatpush2.msra.mxu0 %v481
      %703 = vmatprep.mubr.f32.mxu0 %v554
      %704 = vmatmul.mubr.f32.gmra.mxu0 %v552
      %v705 = vpop.f32.mrf.mxu0
      %v706 = vadd.f32 %v636, %v705
      %v707 = vpop.f32.mrf.mxu0
      %708 = vdwg.mxu0
      %709 = vmatprep.subr.mxu0 0.0
      %710 = vmatpush1.msra.mxu0 %v512
      %711 = vmatprep.subr.mxu0 0.0
      %712 = vmatpush1.msra.mxu0 %v511
      %713 = vmatprep.subr.mxu0 0.0
      %714 = vmatpush1.msra.mxu0 %v510
      %715 = vmatprep.subr.mxu0 0.0
      %716 = vmatpush1.msra.mxu0 %v509
      %717 = vmatprep.subr.mxu0 0.0
      %718 = vmatpush1.msra.mxu0 %v508
      %719 = vmatprep.subr.mxu0 0.0
      %720 = vmatpush1.msra.mxu0 %v507
      %721 = vmatprep.subr.mxu0 0.0
      %722 = vmatpush1.msra.mxu0 %v506
      %723 = vmatprep.subr.mxu0 0.0
      %724 = vmatpush1.msra.mxu0 %v505
      %725 = vmatprep.subr.mxu0 0.0
      %726 = vmatpush1.msra.mxu0 %v504
      %727 = vmatprep.subr.mxu0 0.0
      %728 = vmatpush1.msra.mxu0 %v503
      %729 = vmatprep.subr.mxu0 0.0
      %730 = vmatpush1.msra.mxu0 %v502
      %731 = vmatprep.subr.mxu0 0.0
      %732 = vmatpush1.msra.mxu0 %v501
      %733 = vmatprep.subr.mxu0 0.0
      %734 = vmatpush1.msra.mxu0 %v500
      %735 = vmatprep.subr.mxu0 0.0
      %736 = vmatpush1.msra.mxu0 %v499
      %737 = vmatprep.subr.mxu0 0.0
      %738 = vmatpush1.msra.mxu0 %v498
      %739 = vmatprep.subr.mxu0 0.0
      %740 = vmatpush1.msra.mxu0 %v497
      %741 = vmatprep.subr.mxu0 0.0
      %742 = vmatpush2.msra.mxu0 %v528
      %743 = vmatprep.subr.mxu0 0.0
      %744 = vmatpush2.msra.mxu0 %v527
      %745 = vmatprep.subr.mxu0 0.0
      %746 = vmatpush2.msra.mxu0 %v526
      %747 = vmatprep.subr.mxu0 0.0
      %748 = vmatpush2.msra.mxu0 %v525
      %749 = vmatprep.subr.mxu0 0.0
      %750 = vmatpush2.msra.mxu0 %v524
      %751 = vmatprep.subr.mxu0 0.0
      %752 = vmatpush2.msra.mxu0 %v523
      %753 = vmatprep.subr.mxu0 0.0
      %754 = vmatpush2.msra.mxu0 %v522
      %755 = vmatprep.subr.mxu0 0.0
      %756 = vmatpush2.msra.mxu0 %v521
      %757 = vmatprep.subr.mxu0 0.0
      %758 = vmatpush2.msra.mxu0 %v520
      %759 = vmatprep.subr.mxu0 0.0
      %760 = vmatpush2.msra.mxu0 %v519
      %761 = vmatprep.subr.mxu0 0.0
      %762 = vmatpush2.msra.mxu0 %v518
      %763 = vmatprep.subr.mxu0 0.0
      %764 = vmatpush2.msra.mxu0 %v517
      %765 = vmatprep.subr.mxu0 0.0
      %766 = vmatpush2.msra.mxu0 %v516
      %767 = vmatprep.subr.mxu0 0.0
      %768 = vmatpush2.msra.mxu0 %v515
      %769 = vmatprep.subr.mxu0 0.0
      %770 = vmatpush2.msra.mxu0 %v514
      %771 = vmatprep.subr.mxu0 0.0
      %772 = vmatpush2.msra.mxu0 %v513
      %773 = vmatprep.mubr.f32.mxu0 %v562
      %774 = vmatmul.mubr.f32.gmra.mxu0 %v561
      %v775 = vpop.f32.mrf.mxu0
      %v776 = vadd.f32 %v706, %v775
      %v777 = vpop.f32.mrf.mxu0
      %778 = vdwg.mxu0
      %v779 = vmax.f32 %v776, 0.0
      %780 = vst [vmem:[#allocation10] sm:$0x3] %v779
      %v781 = vld [vmem:[#allocation3] sm:$0xff]
      %v782 = vld [vmem:[#allocation3 + $0x8] sm:$0xf]
      %v783 = vmul.f32 %v781, 0.125
      %v784 = vmul.f32 %v782, 0.125
      %v785 = vmax.f32 %v783, 0.0
      %v786 = vmax.f32 %v784, 0.0
      %v787 = vld [vmem:[#allocation9] sm:$0xff]
      %v788 = vld [vmem:[#allocation9 + $0x8] sm:$0xff]
      %v789 = vld [vmem:[#allocation9 + $0x10] sm:$0xff]
      %v790 = vld [vmem:[#allocation9 + $0x18] sm:$0xff]
      %v791 = vld [vmem:[#allocation9 + $0x20] sm:$0xff]
      %v792 = vld [vmem:[#allocation9 + $0x28] sm:$0xff]
      %v793 = vld [vmem:[#allocation9 + $0x30] sm:$0xff]
      %v794 = vld [vmem:[#allocation9 + $0x38] sm:$0xff]
      %v795 = vld [vmem:[#allocation9 + $0x40] sm:$0xff]
      %v796 = vld [vmem:[#allocation9 + $0x48] sm:$0xff]
      %v797 = vld [vmem:[#allocation9 + $0x50] sm:$0xff]
      %v798 = vld [vmem:[#allocation9 + $0x58] sm:$0xff]
      %v799 = vld [vmem:[#allocation9 + $0x60] sm:$0xff]
      %v800 = vld [vmem:[#allocation9 + $0x68] sm:$0xff]
      %v801 = vld [vmem:[#allocation9 + $0x70] sm:$0xff]
      %v802 = vld [vmem:[#allocation9 + $0x78] sm:$0xff]
      %v803 = vld [vmem:[#allocation9 + $0x80] sm:$0xff]
      %v804 = vld [vmem:[#allocation9 + $0x88] sm:$0xff]
      %v805 = vld [vmem:[#allocation9 + $0x90] sm:$0xff]
      %v806 = vld [vmem:[#allocation9 + $0x98] sm:$0xff]
      %v807 = vld [vmem:[#allocation9 + $0xa0] sm:$0xff]
      %v808 = vld [vmem:[#allocation9 + $0xa8] sm:$0xff]
      %v809 = vld [vmem:[#allocation9 + $0xb0] sm:$0xff]
      %v810 = vld [vmem:[#allocation9 + $0xb8] sm:$0xff]
      %v811 = vld [vmem:[#allocation9 + $0xc0] sm:$0xff]
      %v812 = vld [vmem:[#allocation9 + $0xc8] sm:$0xff]
      %v813 = vld [vmem:[#allocation9 + $0xd0] sm:$0xff]
      %v814 = vld [vmem:[#allocation9 + $0xd8] sm:$0xff]
      %v815 = vld [vmem:[#allocation9 + $0xe0] sm:$0xff]
      %v816 = vld [vmem:[#allocation9 + $0xe8] sm:$0xff]
      %v817 = vld [vmem:[#allocation9 + $0xf0] sm:$0xff]
      %v818 = vld [vmem:[#allocation9 + $0xf8] sm:$0xff]
      %v819 = vld [vmem:[#allocation9 + $0x100] sm:$0xff]
      %v820 = vld [vmem:[#allocation9 + $0x108] sm:$0xff]
      %v821 = vld [vmem:[#allocation9 + $0x110] sm:$0xff]
      %v822 = vld [vmem:[#allocation9 + $0x118] sm:$0xff]
      %v823 = vld [vmem:[#allocation9 + $0x120] sm:$0xff]
      %v824 = vld [vmem:[#allocation9 + $0x128] sm:$0xff]
      %v825 = vld [vmem:[#allocation9 + $0x130] sm:$0xff]
      %v826 = vld [vmem:[#allocation9 + $0x138] sm:$0xff]
      %v827 = vld [vmem:[#allocation9 + $0x140] sm:$0xff]
      %v828 = vld [vmem:[#allocation9 + $0x148] sm:$0xff]
      %v829 = vld [vmem:[#allocation9 + $0x150] sm:$0xff]
      %v830 = vld [vmem:[#allocation9 + $0x158] sm:$0xff]
      %v831 = vld [vmem:[#allocation9 + $0x160] sm:$0xff]
      %v832 = vld [vmem:[#allocation9 + $0x168] sm:$0xff]
      %v833 = vld [vmem:[#allocation9 + $0x170] sm:$0xff]
      %v834 = vld [vmem:[#allocation9 + $0x178] sm:$0xff]
      %v835 = vld [vmem:[#allocation9 + $0x180] sm:$0xff]
      %v836 = vld [vmem:[#allocation9 + $0x188] sm:$0xff]
      %v837 = vld [vmem:[#allocation9 + $0x190] sm:$0xff]
      %v838 = vld [vmem:[#allocation9 + $0x198] sm:$0xff]
      %v839 = vld [vmem:[#allocation9 + $0x1a0] sm:$0xff]
      %v840 = vld [vmem:[#allocation9 + $0x1a8] sm:$0xff]
      %v841 = vld [vmem:[#allocation9 + $0x1b0] sm:$0xff]
      %v842 = vld [vmem:[#allocation9 + $0x1b8] sm:$0xff]
      %v843 = vld [vmem:[#allocation9 + $0x1c0] sm:$0xff]
      %v844 = vld [vmem:[#allocation9 + $0x1c8] sm:$0xff]
      %v845 = vld [vmem:[#allocation9 + $0x1d0] sm:$0xff]
      %v846 = vld [vmem:[#allocation9 + $0x1d8] sm:$0xff]
      %v847 = vld [vmem:[#allocation9 + $0x1e0] sm:$0xff]
      %v848 = vld [vmem:[#allocation9 + $0x1e8] sm:$0xff]
      %v849 = vld [vmem:[#allocation9 + $0x1f0] sm:$0xff]
      %v850 = vld [vmem:[#allocation9 + $0x1f8] sm:$0xff]
      %v851 = vld [vmem:[#allocation9 + $0x200] sm:$0xff]
      %v852 = vld [vmem:[#allocation9 + $0x208] sm:$0xff]
      %v853 = vld [vmem:[#allocation9 + $0x210] sm:$0xff]
      %v854 = vld [vmem:[#allocation9 + $0x218] sm:$0xff]
      %v855 = vld [vmem:[#allocation9 + $0x220] sm:$0xff]
      %v856 = vld [vmem:[#allocation9 + $0x228] sm:$0xff]
      %v857 = vld [vmem:[#allocation9 + $0x230] sm:$0xff]
      %v858 = vld [vmem:[#allocation9 + $0x238] sm:$0xff]
      %v859 = vld [vmem:[#allocation9 + $0x240] sm:$0xff]
      %v860 = vld [vmem:[#allocation9 + $0x248] sm:$0xff]
      %v861 = vld [vmem:[#allocation9 + $0x250] sm:$0xff]
      %v862 = vld [vmem:[#allocation9 + $0x258] sm:$0xff]
      %v863 = vld [vmem:[#allocation9 + $0x260] sm:$0xff]
      %v864 = vld [vmem:[#allocation9 + $0x268] sm:$0xff]
      %v865 = vld [vmem:[#allocation9 + $0x270] sm:$0xff]
      %v866 = vld [vmem:[#allocation9 + $0x278] sm:$0xff]
      %v867 = vld [vmem:[#allocation9 + $0x280] sm:$0xff]
      %v868 = vld [vmem:[#allocation9 + $0x288] sm:$0xff]
      %v869 = vld [vmem:[#allocation9 + $0x290] sm:$0xff]
      %v870 = vld [vmem:[#allocation9 + $0x298] sm:$0xff]
      %v871 = vld [vmem:[#allocation9 + $0x2a0] sm:$0xff]
      %v872 = vld [vmem:[#allocation9 + $0x2a8] sm:$0xff]
      %v873 = vld [vmem:[#allocation9 + $0x2b0] sm:$0xff]
      %v874 = vld [vmem:[#allocation9 + $0x2b8] sm:$0xff]
      %v875 = vld [vmem:[#allocation9 + $0x2c0] sm:$0xff]
      %v876 = vld [vmem:[#allocation9 + $0x2c8] sm:$0xff]
      %v877 = vld [vmem:[#allocation9 + $0x2d0] sm:$0xff]
      %v878 = vld [vmem:[#allocation9 + $0x2d8] sm:$0xff]
      %v879 = vld [vmem:[#allocation9 + $0x2e0] sm:$0xff]
      %v880 = vld [vmem:[#allocation9 + $0x2e8] sm:$0xff]
      %v881 = vld [vmem:[#allocation9 + $0x2f0] sm:$0xff]
      %v882 = vld [vmem:[#allocation9 + $0x2f8] sm:$0xff]
      %v883 = vld [vmem:[%s3] sm:$0x1]
      %v885 = vlaneseq
      %v886 = vshrl.u32 %v885, 7
      %v887 = vsub.s32 0, %v886
      %v888 = vrot.slane %v883, %v887
      %v892 = vcombine.high %v785, %v785
      %v894 = vunpack.c.l.s4 1983009808
      %v895 = vunpack.c.0.s8 %v894
      %v896 = vlaneseq
      %v897 = vshrl.u32 %v896, 7
      %v898 = vsub.s32 %v895, %v897
      %v899 = vrot.slane %v785, %v898
      %v901 = vunpack.c.l.s4 1983009808
      %v902 = vunpack.c.0.s8 %v901
      %v903 = vlaneseq
      %v904 = vshrl.u32 %v903, 7
      %v905 = vsub.s32 %v902, %v904
      %v906 = vrot.slane %v892, %v905
      %v907 = vcombine.high %v899, %v899
      %v908 = vcombine.high %v906, %v906
      %v910 = vunpack.c.l.s4 1983009808
      %v911 = vunpack.c.0.s8 %v910
      %v912 = vlaneseq
      %v913 = vshrl.u32 %v912, 7
      %v914 = vsub.s32 %v911, %v913
      %v915 = vrot.slane %v786, %v914
      %v916 = vcombine.high %v915, %v915
      %923 = vmatprep.subr.mxu0 0.0
      %924 = vmatpush1.msra.mxu0 %v802
      %925 = vmatprep.subr.mxu0 0.0
      %926 = vmatpush1.msra.mxu0 %v801
      %927 = vmatprep.subr.mxu0 0.0
      %928 = vmatpush1.msra.mxu0 %v800
      %929 = vmatprep.subr.mxu0 0.0
      %930 = vmatpush1.msra.mxu0 %v799
      %931 = vmatprep.subr.mxu0 0.0
      %932 = vmatpush1.msra.mxu0 %v798
      %933 = vmatprep.subr.mxu0 0.0
      %934 = vmatpush1.msra.mxu0 %v797
      %935 = vmatprep.subr.mxu0 0.0
      %936 = vmatpush1.msra.mxu0 %v796
      %937 = vmatprep.subr.mxu0 0.0
      %938 = vmatpush1.msra.mxu0 %v795
      %939 = vmatprep.subr.mxu0 0.0
      %940 = vmatpush1.msra.mxu0 %v794
      %941 = vmatprep.subr.mxu0 0.0
      %942 = vmatpush1.msra.mxu0 %v793
      %943 = vmatprep.subr.mxu0 0.0
      %944 = vmatpush1.msra.mxu0 %v792
      %945 = vmatprep.subr.mxu0 0.0
      %946 = vmatpush1.msra.mxu0 %v791
      %947 = vmatprep.subr.mxu0 0.0
      %948 = vmatpush1.msra.mxu0 %v790
      %949 = vmatprep.subr.mxu0 0.0
      %950 = vmatpush1.msra.mxu0 %v789
      %951 = vmatprep.subr.mxu0 0.0
      %952 = vmatpush1.msra.mxu0 %v788
      %953 = vmatprep.subr.mxu0 0.0
      %954 = vmatpush1.msra.mxu0 %v787
      %955 = vmatprep.subr.mxu0 0.0
      %956 = vmatpush2.msra.mxu0 %v818
      %957 = vmatprep.subr.mxu0 0.0
      %958 = vmatpush2.msra.mxu0 %v817
      %959 = vmatprep.subr.mxu0 0.0
      %960 = vmatpush2.msra.mxu0 %v816
      %961 = vmatprep.subr.mxu0 0.0
      %962 = vmatpush2.msra.mxu0 %v815
      %963 = vmatprep.subr.mxu0 0.0
      %964 = vmatpush2.msra.mxu0 %v814
      %965 = vmatprep.subr.mxu0 0.0
      %966 = vmatpush2.msra.mxu0 %v813
      %967 = vmatprep.subr.mxu0 0.0
      %968 = vmatpush2.msra.mxu0 %v812
      %969 = vmatprep.subr.mxu0 0.0
      %970 = vmatpush2.msra.mxu0 %v811
      %971 = vmatprep.subr.mxu0 0.0
      %972 = vmatpush2.msra.mxu0 %v810
      %973 = vmatprep.subr.mxu0 0.0
      %974 = vmatpush2.msra.mxu0 %v809
      %975 = vmatprep.subr.mxu0 0.0
      %976 = vmatpush2.msra.mxu0 %v808
      %977 = vmatprep.subr.mxu0 0.0
      %978 = vmatpush2.msra.mxu0 %v807
      %979 = vmatprep.subr.mxu0 0.0
      %980 = vmatpush2.msra.mxu0 %v806
      %981 = vmatprep.subr.mxu0 0.0
      %982 = vmatpush2.msra.mxu0 %v805
      %983 = vmatprep.subr.mxu0 0.0
      %984 = vmatpush2.msra.mxu0 %v804
      %985 = vmatprep.subr.mxu0 0.0
      %986 = vmatpush2.msra.mxu0 %v803
      %987 = vmatprep.mubr.f32.mxu0 %v907
      %988 = vmatmul.mubr.f32.gmra.mxu0 %v899
      %v989 = vpop.f32.mrf.mxu0
      %v990 = vadd.f32 %v888, %v989
      %v991 = vpop.f32.mrf.mxu0
      %992 = vdwg.mxu0
      %993 = vmatprep.subr.mxu0 0.0
      %994 = vmatpush1.msra.mxu0 %v834
      %995 = vmatprep.subr.mxu0 0.0
      %996 = vmatpush1.msra.mxu0 %v833
      %997 = vmatprep.subr.mxu0 0.0
      %998 = vmatpush1.msra.mxu0 %v832
      %999 = vmatprep.subr.mxu0 0.0
      %1000 = vmatpush1.msra.mxu0 %v831
      %1001 = vmatprep.subr.mxu0 0.0
      %1002 = vmatpush1.msra.mxu0 %v830
      %1003 = vmatprep.subr.mxu0 0.0
      %1004 = vmatpush1.msra.mxu0 %v829
      %1005 = vmatprep.subr.mxu0 0.0
      %1006 = vmatpush1.msra.mxu0 %v828
      %1007 = vmatprep.subr.mxu0 0.0
      %1008 = vmatpush1.msra.mxu0 %v827
      %1009 = vmatprep.subr.mxu0 0.0
      %1010 = vmatpush1.msra.mxu0 %v826
      %1011 = vmatprep.subr.mxu0 0.0
      %1012 = vmatpush1.msra.mxu0 %v825
      %1013 = vmatprep.subr.mxu0 0.0
      %1014 = vmatpush1.msra.mxu0 %v824
      %1015 = vmatprep.subr.mxu0 0.0
      %1016 = vmatpush1.msra.mxu0 %v823
      %1017 = vmatprep.subr.mxu0 0.0
      %1018 = vmatpush1.msra.mxu0 %v822
      %1019 = vmatprep.subr.mxu0 0.0
      %1020 = vmatpush1.msra.mxu0 %v821
      %1021 = vmatprep.subr.mxu0 0.0
      %1022 = vmatpush1.msra.mxu0 %v820
      %1023 = vmatprep.subr.mxu0 0.0
      %1024 = vmatpush1.msra.mxu0 %v819
      %1025 = vmatprep.subr.mxu0 0.0
      %1026 = vmatpush2.msra.mxu0 %v850
      %1027 = vmatprep.subr.mxu0 0.0
      %1028 = vmatpush2.msra.mxu0 %v849
      %1029 = vmatprep.subr.mxu0 0.0
      %1030 = vmatpush2.msra.mxu0 %v848
      %1031 = vmatprep.subr.mxu0 0.0
      %1032 = vmatpush2.msra.mxu0 %v847
      %1033 = vmatprep.subr.mxu0 0.0
      %1034 = vmatpush2.msra.mxu0 %v846
      %1035 = vmatprep.subr.mxu0 0.0
      %1036 = vmatpush2.msra.mxu0 %v845
      %1037 = vmatprep.subr.mxu0 0.0
      %1038 = vmatpush2.msra.mxu0 %v844
      %1039 = vmatprep.subr.mxu0 0.0
      %1040 = vmatpush2.msra.mxu0 %v843
      %1041 = vmatprep.subr.mxu0 0.0
      %1042 = vmatpush2.msra.mxu0 %v842
      %1043 = vmatprep.subr.mxu0 0.0
      %1044 = vmatpush2.msra.mxu0 %v841
      %1045 = vmatprep.subr.mxu0 0.0
      %1046 = vmatpush2.msra.mxu0 %v840
      %1047 = vmatprep.subr.mxu0 0.0
      %1048 = vmatpush2.msra.mxu0 %v839
      %1049 = vmatprep.subr.mxu0 0.0
      %1050 = vmatpush2.msra.mxu0 %v838
      %1051 = vmatprep.subr.mxu0 0.0
      %1052 = vmatpush2.msra.mxu0 %v837
      %1053 = vmatprep.subr.mxu0 0.0
      %1054 = vmatpush2.msra.mxu0 %v836
      %1055 = vmatprep.subr.mxu0 0.0
      %1056 = vmatpush2.msra.mxu0 %v835
      %1057 = vmatprep.mubr.f32.mxu0 %v908
      %1058 = vmatmul.mubr.f32.gmra.mxu0 %v906
      %v1059 = vpop.f32.mrf.mxu0
      %v1060 = vadd.f32 %v990, %v1059
      %v1061 = vpop.f32.mrf.mxu0
      %1062 = vdwg.mxu0
      %1063 = vmatprep.subr.mxu0 0.0
      %1064 = vmatpush1.msra.mxu0 %v866
      %1065 = vmatprep.subr.mxu0 0.0
      %1066 = vmatpush1.msra.mxu0 %v865
      %1067 = vmatprep.subr.mxu0 0.0
      %1068 = vmatpush1.msra.mxu0 %v864
      %1069 = vmatprep.subr.mxu0 0.0
      %1070 = vmatpush1.msra.mxu0 %v863
      %1071 = vmatprep.subr.mxu0 0.0
      %1072 = vmatpush1.msra.mxu0 %v862
      %1073 = vmatprep.subr.mxu0 0.0
      %1074 = vmatpush1.msra.mxu0 %v861
      %1075 = vmatprep.subr.mxu0 0.0
      %1076 = vmatpush1.msra.mxu0 %v860
      %1077 = vmatprep.subr.mxu0 0.0
      %1078 = vmatpush1.msra.mxu0 %v859
      %1079 = vmatprep.subr.mxu0 0.0
      %1080 = vmatpush1.msra.mxu0 %v858
      %1081 = vmatprep.subr.mxu0 0.0
      %1082 = vmatpush1.msra.mxu0 %v857
      %1083 = vmatprep.subr.mxu0 0.0
      %1084 = vmatpush1.msra.mxu0 %v856
      %1085 = vmatprep.subr.mxu0 0.0
      %1086 = vmatpush1.msra.mxu0 %v855
      %1087 = vmatprep.subr.mxu0 0.0
      %1088 = vmatpush1.msra.mxu0 %v854
      %1089 = vmatprep.subr.mxu0 0.0
      %1090 = vmatpush1.msra.mxu0 %v853
      %1091 = vmatprep.subr.mxu0 0.0
      %1092 = vmatpush1.msra.mxu0 %v852
      %1093 = vmatprep.subr.mxu0 0.0
      %1094 = vmatpush1.msra.mxu0 %v851
      %1095 = vmatprep.subr.mxu0 0.0
      %1096 = vmatpush2.msra.mxu0 %v882
      %1097 = vmatprep.subr.mxu0 0.0
      %1098 = vmatpush2.msra.mxu0 %v881
      %1099 = vmatprep.subr.mxu0 0.0
      %1100 = vmatpush2.msra.mxu0 %v880
      %1101 = vmatprep.subr.mxu0 0.0
      %1102 = vmatpush2.msra.mxu0 %v879
      %1103 = vmatprep.subr.mxu0 0.0
      %1104 = vmatpush2.msra.mxu0 %v878
      %1105 = vmatprep.subr.mxu0 0.0
      %1106 = vmatpush2.msra.mxu0 %v877
      %1107 = vmatprep.subr.mxu0 0.0
      %1108 = vmatpush2.msra.mxu0 %v876
      %1109 = vmatprep.subr.mxu0 0.0
      %1110 = vmatpush2.msra.mxu0 %v875
      %1111 = vmatprep.subr.mxu0 0.0
      %1112 = vmatpush2.msra.mxu0 %v874
      %1113 = vmatprep.subr.mxu0 0.0
      %1114 = vmatpush2.msra.mxu0 %v873
      %1115 = vmatprep.subr.mxu0 0.0
      %1116 = vmatpush2.msra.mxu0 %v872
      %1117 = vmatprep.subr.mxu0 0.0
      %1118 = vmatpush2.msra.mxu0 %v871
      %1119 = vmatprep.subr.mxu0 0.0
      %1120 = vmatpush2.msra.mxu0 %v870
      %1121 = vmatprep.subr.mxu0 0.0
      %1122 = vmatpush2.msra.mxu0 %v869
      %1123 = vmatprep.subr.mxu0 0.0
      %1124 = vmatpush2.msra.mxu0 %v868
      %1125 = vmatprep.subr.mxu0 0.0
      %1126 = vmatpush2.msra.mxu0 %v867
      %1127 = vmatprep.mubr.f32.mxu0 %v916
      %1128 = vmatmul.mubr.f32.gmra.mxu0 %v915
      %v1129 = vpop.f32.mrf.mxu0
      %v1130 = vadd.f32 %v1060, %v1129
      %v1131 = vpop.f32.mrf.mxu0
      %1132 = vdwg.mxu0
      %v1133 = vmax.f32 %v1130, 0.0
      %1134 = vst [vmem:[#allocation11] sm:$0x3] %v1133
    $region37: #{tpu_custom_call.1} parent=1 // pred_fallthru
      _
    // Predicated region
    $region38: #{tpu_custom_call.1} parent=1 // pred_check
      _
    $region39: #{tpu_custom_call.1} parent=1 // pred_check_branch
      %1136 = sbr.rel (0) target = $region41
    $region40: #{tpu_custom_call.1} parent=1 // pred_region
      %s1138 = ssub.s32 32, 32
      %1139 = vsyncadd [#allocation6], %s1138
      %s1141 = sshll.u32 [#allocation10], 4
      %s1142 = int_to_ptr.vmem [resolvable:$true] %s1141
      %1144 = dma.vmem_to_hbm [thread:$0]  %s1142, 32, %s4, [#allocation6]
    $region41: #{tpu_custom_call.1} parent=1 // pred_fallthru
      _
    // Predicated region
    $region42: #{tpu_custom_call.1} parent=1 // pred_check
      _
    $region43: #{tpu_custom_call.1} parent=1 // pred_check_branch
      %1146 = sbr.rel (0) target = $region45
    $region44: #{tpu_custom_call.1} parent=1 // pred_region
      %s1148 = ssub.s32 32, 32
      %1149 = vsyncadd [#allocation12], %s1148
      %s1151 = sshll.u32 [#allocation11], 4
      %s1152 = int_to_ptr.vmem [resolvable:$true] %s1151
      %1154 = dma.vmem_to_hbm [thread:$0]  %s1152, 32, %s5, [#allocation12]
    $region45: #{tpu_custom_call.1} parent=1 // pred_fallthru
      _
    // Predicated region
    $region46: #{tpu_custom_call.1} parent=1 // pred_check
      _
    $region47: #{tpu_custom_call.1} parent=1 // pred_check_branch
      %1156 = sbr.rel (0) target = $region49
    $region48: #{tpu_custom_call.1} parent=1 // pred_region
      %1157 = dma.done [#allocation6], 32
    $region49: #{tpu_custom_call.1} parent=1 // pred_fallthru
      _
    // Predicated region
    $region50: #{tpu_custom_call.1} parent=1 // pred_check
      _
    $region51: #{tpu_custom_call.1} parent=1 // pred_check_branch
      %1159 = sbr.rel (0) target = $region53
    $region52: #{tpu_custom_call.1} parent=1 // pred_region
      %1160 = dma.done [#allocation12], 32
    $region53: #{tpu_custom_call.1} parent=1 // pred_fallthru
      _
    %1161 = vsyncpa [#allocation5], 1
    %1162 = vsyncpa [#allocation8], 1
    %1163 = vsyncpa [#allocation6], 1
    %1164 = vsyncpa [#allocation12], 1

</llo_original>
